<compile_context>
chip_gen: v6e
topology: v6e:2x2x1
jax: 0.10.0
libtpu: 0.0.40
codegen_flags: <defaults>
</compile_context>

<pallas_src>
import jax
import jax.numpy as jnp
from jax.experimental import pallas as pl
from jax.experimental.pallas import tpu as pltpu


def _round_up(x, m):
    return (x + m - 1) // m * m


def _mlp_kernel(x_ref, w1_ref, b1_ref, w2_ref, b2_ref, w3_ref, b3_ref, o_ref):
    # x arrives in its native f32; cast to bf16 in-register (MXU input dtype).
    x = x_ref[...].astype(jnp.bfloat16)
    # fc1 + relu (K = in_dim, a multiple of 16, so bf16 layout is clean).
    h1 = jnp.dot(x, w1_ref[...], preferred_element_type=jnp.float32)
    h1 = jnp.maximum(h1 + b1_ref[...], 0.0)
    # dropout (eval mode) == identity
    # fc2 + relu
    h2 = jnp.dot(h1.astype(jnp.bfloat16), w2_ref[...],
                 preferred_element_type=jnp.float32)
    h2 = jnp.maximum(h2 + b2_ref[...], 0.0)
    # dropout (eval mode) == identity
    # fc3 -- narrow (N = 2) logits, stored directly (masked lane store).
    out = jnp.dot(h2.astype(jnp.bfloat16), w3_ref[...],
                  preferred_element_type=jnp.float32)
    o_ref[...] = (out + b3_ref[...]).astype(o_ref.dtype)


def prepare_params(params):
    """One-time pad (contraction dims to multiples of 128) + bf16 cast."""
    w1, b1, w2, b2, w3, b3 = params
    in_dim = w1.shape[0]                   # kept unpadded (80 / 640 / ...)
    h1_pad = _round_up(w1.shape[1], 128)   # 400 -> 512
    h2_pad = _round_up(w2.shape[1], 128)   # 50  -> 128
    out_dim = w3.shape[1]                  # 2   (kept narrow)

    def pad_w(w, r, c):
        return jnp.pad(w, ((0, r - w.shape[0]),
                           (0, c - w.shape[1]))).astype(jnp.bfloat16)

    def pad_b(b, c):
        return jnp.pad(b, (0, c - b.shape[0])).reshape(1, c).astype(jnp.float32)

    return {
        "w1": pad_w(w1, in_dim, h1_pad), "b1": pad_b(b1, h1_pad),
        "w2": pad_w(w2, h1_pad, h2_pad), "b2": pad_b(b2, h2_pad),
        "w3": pad_w(w3, h2_pad, out_dim), "b3": pad_b(b3, out_dim),
        "in_dim": in_dim, "out_dim": out_dim,
    }


def dnn_power_bands_forward(x, prepped):
    """x: (B, n_channels, power_bands) or anything flattening to (B, C*P)."""
    w1, b1 = prepped["w1"], prepped["b1"]
    w2, b2 = prepped["w2"], prepped["b2"]
    w3, b3 = prepped["w3"], prepped["b3"]
    in_dim, out_dim = prepped["in_dim"], prepped["out_dim"]

    x2d = x.reshape(-1, in_dim)            # no pad, no cast -- zero extra HBM
    B = x2d.shape[0]

    # Tile selection: big tiles amortize per-step overhead; guarantee >= 2
    # grid steps for moderate B so v7x's two TensorCores both get work; keep
    # tb a multiple of 16 (bf16 sublane packing).  Ragged last tile is fine.
    TB_MAX = 1024
    tb = min(TB_MAX, max(16, _round_up(-(-B // 2), 16)))
    grid = (pl.cdiv(B, tb),)

    # Advisory cost hint consistent with the real (unpadded x, narrow out) IO.
    flops = 2 * B * (in_dim * w1.shape[1]
                     + w1.shape[1] * w2.shape[1]
                     + w2.shape[1] * out_dim)
    bytes_accessed = (x2d.size * x2d.dtype.itemsize
                      + (w1.size + w2.size + w3.size) * 2
                      + (b1.size + b2.size + b3.size) * 4
                      + B * out_dim * 4)

    def const(a):  # weights/biases: same block every step -> stay resident
        return pl.BlockSpec(a.shape, lambda i: (0,) * a.ndim)

    out = pl.pallas_call(
        _mlp_kernel,
        out_shape=jax.ShapeDtypeStruct((B, out_dim), jnp.float32),
        grid=grid,
        in_specs=[pl.BlockSpec((tb, in_dim), lambda i: (i, 0)),
                  const(w1), const(b1),
                  const(w2), const(b2),
                  const(w3), const(b3)],
        out_specs=pl.BlockSpec((tb, out_dim), lambda i: (i, 0)),
        compiler_params=pltpu.CompilerParams(
            dimension_semantics=("parallel",)),
        cost_estimate=pl.CostEstimate(flops=flops, transcendentals=0,
                                      bytes_accessed=bytes_accessed),
    )(x2d, w1, b1, w2, b2, w3, b3)

    return out


def init_params(key, n_channels, power_bands):
    """Kaiming-uniform-style init matching the torch module's shapes (f32)."""
    in_dim = n_channels * power_bands
    dims = [(in_dim, 400), (400, 50), (50, 2)]
    params = []
    for fan_in, fan_out in dims:
        kw, kb, key = jax.random.split(key, 3)
        # kaiming_uniform_ with nonlinearity='relu': bound = sqrt(6 / fan_in)
        bound_w = jnp.sqrt(6.0 / fan_in)
        w = jax.random.uniform(kw, (fan_in, fan_out), jnp.float32,
                               -bound_w, bound_w)
        # nn.Linear default bias init: U(-1/sqrt(fan_in), 1/sqrt(fan_in))
        bound_b = 1.0 / jnp.sqrt(fan_in)
        b = jax.random.uniform(kb, (fan_out,), jnp.float32, -bound_b, bound_b)
        params += [w, b]
    return tuple(params)


if __name__ == "__main__":
    # Small deterministic example consistent with the module's forward:
    # x of shape (batch, n_channels, power_bands), flattened inside.
    n_channels, power_bands, batch = 16, 5, 4
    key = jax.random.PRNGKey(0)
    kx, kp = jax.random.split(key)

    x = jax.random.normal(kx, (batch, n_channels, power_bands), jnp.float32)
    raw_params = init_params(kp, n_channels, power_bands)
    prepped = prepare_params(raw_params)   # one-time pad/cast, hoisted out

    out = dnn_power_bands_forward(x, prepped)
    jax.block_until_ready(out)
    assert out.shape == (batch, 2)
    assert bool(jnp.all(jnp.isfinite(out)))

    # f32 reference of the same forward (dropout is identity in eval mode).
    w1, b1, w2, b2, w3, b3 = raw_params
    xf = x.reshape(-1, n_channels * power_bands)
    ref = jnp.maximum(xf @ w1 + b1, 0.0)
    ref = jnp.maximum(ref @ w2 + b2, 0.0)
    ref = ref @ w3 + b3
    # Loose tolerance: activations/weights are bf16 on the MXU, accum in f32.
    assert float(jnp.max(jnp.abs(out - ref))) < 0.2

    print("KERNEL_OK")
</pallas_src>

<mosaic_0001>
module attributes {stable_mosaic.version = 11 : i64} {
  func.func @_mlp_kernel(%arg0: i32, %arg1: memref<16x80xf32, #tpu.memory_space<vmem>>, %arg2: memref<80x512xbf16, #tpu.memory_space<vmem>>, %arg3: memref<1x512xf32, #tpu.memory_space<vmem>>, %arg4: memref<512x128xbf16, #tpu.memory_space<vmem>>, %arg5: memref<1x128xf32, #tpu.memory_space<vmem>>, %arg6: memref<128x2xbf16, #tpu.memory_space<vmem>>, %arg7: memref<1x2xf32, #tpu.memory_space<vmem>>, %arg8: memref<16x2xf32, #tpu.memory_space<vmem>>) attributes {dimension_semantics = [#tpu.dimension_semantics<parallel>], iteration_bounds = array<i64: 1>, scalar_prefetch = 0 : i64, scratch_operands = 0 : i64, tpu.core_type = #tpu.core_type<tc>, window_params = [{transform_indices = @transform_0, window_bounds = array<i64: 16, 80>}, {pipeline_mode = #tpu.pipeline_mode<synchronous>, transform_indices = @transform_1, window_bounds = array<i64: 80, 512>}, {pipeline_mode = #tpu.pipeline_mode<synchronous>, transform_indices = @transform_2, window_bounds = array<i64: 1, 512>}, {pipeline_mode = #tpu.pipeline_mode<synchronous>, transform_indices = @transform_3, window_bounds = array<i64: 512, 128>}, {pipeline_mode = #tpu.pipeline_mode<synchronous>, transform_indices = @transform_4, window_bounds = array<i64: 1, 128>}, {pipeline_mode = #tpu.pipeline_mode<synchronous>, transform_indices = @transform_5, window_bounds = array<i64: 128, 2>}, {pipeline_mode = #tpu.pipeline_mode<synchronous>, transform_indices = @transform_6, window_bounds = array<i64: 1, 2>}, {transform_indices = @transform_7, window_bounds = array<i64: 16, 2>}]} {
    %c0 = arith.constant 0 : index
    %c0_0 = arith.constant 0 : index
    %0 = vector.load %arg1[%c0, %c0_0] : memref<16x80xf32, #tpu.memory_space<vmem>>, vector<16x80xf32>
    %1 = arith.truncf %0 : vector<16x80xf32> to vector<16x80xbf16>
    %c0_1 = arith.constant 0 : index
    %c0_2 = arith.constant 0 : index
    %2 = vector.load %arg2[%c0_1, %c0_2] : memref<80x512xbf16, #tpu.memory_space<vmem>>, vector<80x512xbf16>
    %cst = arith.constant dense<0.000000e+00> : vector<16x512xf32>
    %3 = tpu.matmul %1, %2, %cst {dimension_numbers = #tpu.dot_dimension_numbers<[1], [0], [0], [1], [0, 0, 1, 1], [], []>} : vector<16x80xbf16>, vector<80x512xbf16>, vector<16x512xf32> -> vector<16x512xf32>
    %c0_3 = arith.constant 0 : index
    %c0_4 = arith.constant 0 : index
    %4 = vector.load %arg3[%c0_3, %c0_4] : memref<1x512xf32, #tpu.memory_space<vmem>>, vector<1x512xf32>
    %5 = vector.broadcast %4 : vector<1x512xf32> to vector<16x512xf32>
    %6 = arith.addf %3, %5 : vector<16x512xf32>
    %cst_5 = arith.constant 0.000000e+00 : f32
    %7 = vector.broadcast %cst_5 : f32 to vector<16x512xf32>
    %8 = arith.maximumf %6, %7 : vector<16x512xf32>
    %9 = arith.truncf %8 : vector<16x512xf32> to vector<16x512xbf16>
    %c0_6 = arith.constant 0 : index
    %c0_7 = arith.constant 0 : index
    %10 = vector.load %arg4[%c0_6, %c0_7] : memref<512x128xbf16, #tpu.memory_space<vmem>>, vector<512x128xbf16>
    %cst_8 = arith.constant dense<0.000000e+00> : vector<16x128xf32>
    %11 = tpu.matmul %9, %10, %cst_8 {dimension_numbers = #tpu.dot_dimension_numbers<[1], [0], [0], [1], [0, 0, 1, 1], [], []>} : vector<16x512xbf16>, vector<512x128xbf16>, vector<16x128xf32> -> vector<16x128xf32>
    %c0_9 = arith.constant 0 : index
    %c0_10 = arith.constant 0 : index
    %12 = vector.load %arg5[%c0_9, %c0_10] : memref<1x128xf32, #tpu.memory_space<vmem>>, vector<1x128xf32>
    %13 = vector.broadcast %12 : vector<1x128xf32> to vector<16x128xf32>
    %14 = arith.addf %11, %13 : vector<16x128xf32>
    %cst_11 = arith.constant 0.000000e+00 : f32
    %15 = vector.broadcast %cst_11 : f32 to vector<16x128xf32>
    %16 = arith.maximumf %14, %15 : vector<16x128xf32>
    %17 = arith.truncf %16 : vector<16x128xf32> to vector<16x128xbf16>
    %c0_12 = arith.constant 0 : index
    %c0_13 = arith.constant 0 : index
    %18 = vector.load %arg6[%c0_12, %c0_13] : memref<128x2xbf16, #tpu.memory_space<vmem>>, vector<128x2xbf16>
    %cst_14 = arith.constant dense<0.000000e+00> : vector<16x2xf32>
    %19 = tpu.matmul %17, %18, %cst_14 {dimension_numbers = #tpu.dot_dimension_numbers<[1], [0], [0], [1], [0, 0, 1, 1], [], []>} : vector<16x128xbf16>, vector<128x2xbf16>, vector<16x2xf32> -> vector<16x2xf32>
    %c0_15 = arith.constant 0 : index
    %c0_16 = arith.constant 0 : index
    %20 = vector.load %arg7[%c0_15, %c0_16] : memref<1x2xf32, #tpu.memory_space<vmem>>, vector<1x2xf32>
    %21 = vector.broadcast %20 : vector<1x2xf32> to vector<16x2xf32>
    %22 = arith.addf %19, %21 : vector<16x2xf32>
    %c0_17 = arith.constant 0 : index
    %c0_18 = arith.constant 0 : index
    %23 = vector.load %arg8[%c0_17, %c0_18] : memref<16x2xf32, #tpu.memory_space<vmem>>, vector<16x2xf32>
    tpu.vector_store %arg8[%c0_17, %c0_18], %22 {strides = array<i32>} : memref<16x2xf32, #tpu.memory_space<vmem>>, vector<16x2xf32>,
    return
  }
  func.func @transform_0(%arg0: i32) -> (i32, i32) {
    %c0_i32 = arith.constant 0 : i32
    %c0_i32_0 = arith.constant 0 : i32
    return %arg0, %c0_i32 : i32, i32
  }
  func.func @transform_1(%arg0: i32) -> (i32, i32) {
    %c0_i32 = arith.constant 0 : i32
    %c0_i32_0 = arith.constant 0 : i32
    %c0_i32_1 = arith.constant 0 : i32
    return %c0_i32, %c0_i32_0 : i32, i32
  }
  func.func @transform_2(%arg0: i32) -> (i32, i32) {
    %c0_i32 = arith.constant 0 : i32
    %c0_i32_0 = arith.constant 0 : i32
    %c0_i32_1 = arith.constant 0 : i32
    return %c0_i32, %c0_i32_0 : i32, i32
  }
  func.func @transform_3(%arg0: i32) -> (i32, i32) {
    %c0_i32 = arith.constant 0 : i32
    %c0_i32_0 = arith.constant 0 : i32
    %c0_i32_1 = arith.constant 0 : i32
    return %c0_i32, %c0_i32_0 : i32, i32
  }
  func.func @transform_4(%arg0: i32) -> (i32, i32) {
    %c0_i32 = arith.constant 0 : i32
    %c0_i32_0 = arith.constant 0 : i32
    %c0_i32_1 = arith.constant 0 : i32
    return %c0_i32, %c0_i32_0 : i32, i32
  }
  func.func @transform_5(%arg0: i32) -> (i32, i32) {
    %c0_i32 = arith.constant 0 : i32
    %c0_i32_0 = arith.constant 0 : i32
    %c0_i32_1 = arith.constant 0 : i32
    return %c0_i32, %c0_i32_0 : i32, i32
  }
  func.func @transform_6(%arg0: i32) -> (i32, i32) {
    %c0_i32 = arith.constant 0 : i32
    %c0_i32_0 = arith.constant 0 : i32
    %c0_i32_1 = arith.constant 0 : i32
    return %c0_i32, %c0_i32_0 : i32, i32
  }
  func.func @transform_7(%arg0: i32) -> (i32, i32) {
    %c0_i32 = arith.constant 0 : i32
    %c0_i32_0 = arith.constant 0 : i32
    return %arg0, %c0_i32 : i32, i32
  }
}

</mosaic_0001>

<llo_original>
// kernel: tpu_custom_call.1
$region0: #{tpu_custom_call.1}
  #allocation0 [shape = 'u32[]', space=smem, size = 0x4, offset = 0x4, fixed_abs, tag = 'smem constant byte address 0x4 - core index']
  #allocation1 [shape = 'u32[144,128]{1,0:T(1,128)}', space=vmem, size = 0x12000, scoped, tag = 'internal scratch']
  %s0 = inlined_call_operand.vmem [shape: f32[4,80], index: 0, kind: input, shape index: {}]
  %s1 = inlined_call_operand.hbm [shape: bf16[80,512], index: 1, kind: input, shape index: {}]
  %s2 = inlined_call_operand.vmem [shape: f32[1,512], index: 2, kind: input, shape index: {}]
  %s3 = inlined_call_operand.hbm [shape: bf16[512,128], index: 3, kind: input, shape index: {}]
  %s4 = inlined_call_operand.vmem [shape: f32[1,128], index: 4, kind: input, shape index: {}]
  %s5 = inlined_call_operand.vmem [shape: bf16[128,2], index: 5, kind: input, shape index: {}]
  %s6 = inlined_call_operand.vmem [shape: f32[1,2], index: 6, kind: input, shape index: {}]
  %s7 = inlined_call_operand.vmem [shape: f32[4,2], index: 7, kind: output, shape index: {}]
  %s8 = sld [smem:[#allocation0]]
  $region76: #{tpu_custom_call.1} parent=0
    _
  %s10 = ssub.s32 1, %s8
  %s11 = scalar_select 0, %s10, %s8
  $region1: #{tpu_custom_call.1} parent=0
    #allocation2 [shape = 'u8[81920]{0}', space=vmem, size = 0x14000, scoped, tag = 'input window, operand 1, single buffered']
    #allocation3 [shape = 's32[1]{0}', space=sflag, size = 0x4, scoped, tag = 'scoped memory for tpu_custom_call.1']
    #allocation4 [shape = 'u8[131072]{0}', space=vmem, size = 0x20000, scoped, tag = 'input window, operand 3, single buffered']
    #allocation5 [shape = 's32[1]{0}', space=sflag, size = 0x4, scoped, tag = 'scoped memory for tpu_custom_call.1']
    #allocation6 [shape = 'u8[8192]{0}', space=vmem, size = 0x2000, scoped, tag = 'output window, operand 0, single buffered']
    %12 = vsyncpa [#allocation3], 0
    %13 = vsyncpa [#allocation5], 0
    // Predicated region
    $region2: #{tpu_custom_call.1} parent=1 // pred_check
      _
    $region3: #{tpu_custom_call.1} parent=1 // pred_check_branch
      %15 = sbr.rel (0) target = $region5
    $region4: #{tpu_custom_call.1} parent=1 // pred_region
      _
    $region5: #{tpu_custom_call.1} parent=1 // pred_fallthru
      _
    // Predicated region
    $region6: #{tpu_custom_call.1} parent=1 // pred_check
      _
    $region7: #{tpu_custom_call.1} parent=1 // pred_check_branch
      %17 = sbr.rel (0) target = $region9
    $region8: #{tpu_custom_call.1} parent=1 // pred_region
      %s19 = ssub.s32 2560, 2560
      %20 = vsyncadd [#allocation3], %s19
      %s21 = sshll.u32 [#allocation2], 4
      %s22 = int_to_ptr.vmem [resolvable:$true] %s21
      %27 = dma.hbm_to_vmem [thread:$0]  %s1, 2560, %s22, [#allocation3], 256, 256, 16
    $region9: #{tpu_custom_call.1} parent=1 // pred_fallthru
      _
    // Predicated region
    $region10: #{tpu_custom_call.1} parent=1 // pred_check
      _
    $region11: #{tpu_custom_call.1} parent=1 // pred_check_branch
      %29 = sbr.rel (0) target = $region13
    $region12: #{tpu_custom_call.1} parent=1 // pred_region
      _
    $region13: #{tpu_custom_call.1} parent=1 // pred_fallthru
      _
    // Predicated region
    $region14: #{tpu_custom_call.1} parent=1 // pred_check
      _
    $region15: #{tpu_custom_call.1} parent=1 // pred_check_branch
      %31 = sbr.rel (0) target = $region17
    $region16: #{tpu_custom_call.1} parent=1 // pred_region
      %s33 = ssub.s32 4096, 4096
      %34 = vsyncadd [#allocation5], %s33
      %s35 = sshll.u32 [#allocation4], 4
      %s36 = int_to_ptr.vmem [resolvable:$true] %s35
      %41 = dma.hbm_to_vmem [thread:$0]  %s3, 4096, %s36, [#allocation5], 64, 64, 4
    $region17: #{tpu_custom_call.1} parent=1 // pred_fallthru
      _
    // Predicated region
    $region18: #{tpu_custom_call.1} parent=1 // pred_check
      _
    $region19: #{tpu_custom_call.1} parent=1 // pred_check_branch
      %43 = sbr.rel (0) target = $region21
    $region20: #{tpu_custom_call.1} parent=1 // pred_region
      _
    $region21: #{tpu_custom_call.1} parent=1 // pred_fallthru
      _
    // Predicated region
    $region22: #{tpu_custom_call.1} parent=1 // pred_check
      _
    $region23: #{tpu_custom_call.1} parent=1 // pred_check_branch
      %45 = sbr.rel (0) target = $region25
    $region24: #{tpu_custom_call.1} parent=1 // pred_region
      _
    $region25: #{tpu_custom_call.1} parent=1 // pred_fallthru
      _
    // Predicated region
    $region26: #{tpu_custom_call.1} parent=1 // pred_check
      _
    $region27: #{tpu_custom_call.1} parent=1 // pred_check_branch
      %47 = sbr.rel (0) target = $region29
    $region28: #{tpu_custom_call.1} parent=1 // pred_region
      _
    $region29: #{tpu_custom_call.1} parent=1 // pred_fallthru
      _
    // Predicated region
    $region30: #{tpu_custom_call.1} parent=1 // pred_check
      _
    $region31: #{tpu_custom_call.1} parent=1 // pred_check_branch
      %49 = sbr.rel (0) target = $region33
    $region32: #{tpu_custom_call.1} parent=1 // pred_region
      %50 = dma.done [#allocation3], 2560
    $region33: #{tpu_custom_call.1} parent=1 // pred_fallthru
      _
    // Predicated region
    $region34: #{tpu_custom_call.1} parent=1 // pred_check
      _
    $region35: #{tpu_custom_call.1} parent=1 // pred_check_branch
      %52 = sbr.rel (0) target = $region37
    $region36: #{tpu_custom_call.1} parent=1 // pred_region
      %53 = dma.done [#allocation5], 4096
    $region37: #{tpu_custom_call.1} parent=1 // pred_fallthru
      _
    %v55 = vld [vmem:[%s0] sm:$0xff]
    %v56 = vld [vmem:[%s0 + $0x8] sm:$0xff]
    %v57 = vpack.c.bf16 %v56, %v55
    %v58 = vld [vmem:[#allocation2] sm:$0xff]
    %v59 = vld [vmem:[#allocation2 + $0x8] sm:$0xff]
    %v60 = vld [vmem:[#allocation2 + $0x10] sm:$0xff]
    %v61 = vld [vmem:[#allocation2 + $0x18] sm:$0xff]
    %v62 = vld [vmem:[#allocation2 + $0x20] sm:$0xff]
    %v63 = vld [vmem:[#allocation2 + $0x28] sm:$0xff]
    %v64 = vld [vmem:[#allocation2 + $0x30] sm:$0xff]
    %v65 = vld [vmem:[#allocation2 + $0x38] sm:$0xff]
    %v66 = vld [vmem:[#allocation2 + $0x40] sm:$0xff]
    %v67 = vld [vmem:[#allocation2 + $0x48] sm:$0xff]
    %v68 = vld [vmem:[#allocation2 + $0x50] sm:$0xff]
    %v69 = vld [vmem:[#allocation2 + $0x58] sm:$0xff]
    %v70 = vld [vmem:[#allocation2 + $0x60] sm:$0xff]
    %v71 = vld [vmem:[#allocation2 + $0x68] sm:$0xff]
    %v72 = vld [vmem:[#allocation2 + $0x70] sm:$0xff]
    %v73 = vld [vmem:[#allocation2 + $0x78] sm:$0xff]
    %v74 = vld [vmem:[#allocation2 + $0x80] sm:$0xff]
    %v75 = vld [vmem:[#allocation2 + $0x88] sm:$0xff]
    %v76 = vld [vmem:[#allocation2 + $0x90] sm:$0xff]
    %v77 = vld [vmem:[#allocation2 + $0x98] sm:$0xff]
    %v78 = vld [vmem:[%s2] sm:$0xf]
    %v80 = vlaneseq
    %v81 = vshrl.u32 %v80, 7
    %v82 = vsub.s32 0, %v81
    %v83 = vrot.slane %v78, %v82
    %v84 = vlaneseq
    %v85 = vshrl.u32 %v84, 7
    %v86 = vsub.s32 1, %v85
    %v87 = vrot.slane %v78, %v86
    %v88 = vlaneseq
    %v89 = vshrl.u32 %v88, 7
    %v90 = vsub.s32 2, %v89
    %v91 = vrot.slane %v78, %v90
    %v92 = vlaneseq
    %v93 = vshrl.u32 %v92, 7
    %v94 = vsub.s32 3, %v93
    %v95 = vrot.slane %v78, %v94
    %v120 = vunpack.c.l.b16 %v58
    %v121 = vunpack.c.h.b16 %v58
    %v122 = vunpack.c.l.b16 %v59
    %v123 = vunpack.c.h.b16 %v59
    %v124 = vunpack.c.l.b16 %v60
    %v125 = vunpack.c.h.b16 %v60
    %v126 = vunpack.c.l.b16 %v61
    %v127 = vunpack.c.h.b16 %v61
    %v128 = vunpack.c.l.b16 %v62
    %v129 = vunpack.c.h.b16 %v62
    %v130 = vunpack.c.l.b16 %v63
    %v131 = vunpack.c.h.b16 %v63
    %v132 = vunpack.c.l.b16 %v64
    %v133 = vunpack.c.h.b16 %v64
    %v134 = vunpack.c.l.b16 %v65
    %v135 = vunpack.c.h.b16 %v65
    %v136 = vunpack.c.l.b16 %v66
    %v137 = vunpack.c.h.b16 %v66
    %v138 = vunpack.c.l.b16 %v67
    %v139 = vunpack.c.h.b16 %v67
    %v140 = vunpack.c.l.b16 %v68
    %v141 = vunpack.c.h.b16 %v68
    %v142 = vunpack.c.l.b16 %v69
    %v143 = vunpack.c.h.b16 %v69
    %v144 = vunpack.c.l.b16 %v70
    %v145 = vunpack.c.h.b16 %v70
    %v146 = vunpack.c.l.b16 %v71
    %v147 = vunpack.c.h.b16 %v71
    %v148 = vunpack.c.l.b16 %v72
    %v149 = vunpack.c.h.b16 %v72
    %v150 = vunpack.c.l.b16 %v73
    %v151 = vunpack.c.h.b16 %v73
    %v152 = vunpack.c.l.b16 %v74
    %v153 = vunpack.c.h.b16 %v74
    %v154 = vunpack.c.l.b16 %v75
    %v155 = vunpack.c.h.b16 %v75
    %v156 = vunpack.c.l.b16 %v76
    %v157 = vunpack.c.h.b16 %v76
    %v158 = vunpack.c.l.b16 %v77
    %v159 = vunpack.c.h.b16 %v77
    %v160 = vpack.c.b16 %v124, %v120
    %v161 = vpack.c.b16 %v125, %v121
    %v162 = vpack.c.b16 %v126, %v122
    %v163 = vpack.c.b16 %v127, %v123
    %v164 = vpack.c.b16 %v132, %v128
    %v165 = vpack.c.b16 %v133, %v129
    %v166 = vpack.c.b16 %v134, %v130
    %v167 = vpack.c.b16 %v135, %v131
    %v168 = vpack.c.b16 %v140, %v136
    %v169 = vpack.c.b16 %v141, %v137
    %v170 = vpack.c.b16 %v142, %v138
    %v171 = vpack.c.b16 %v143, %v139
    %v172 = vpack.c.b16 %v148, %v144
    %v173 = vpack.c.b16 %v149, %v145
    %v174 = vpack.c.b16 %v150, %v146
    %v175 = vpack.c.b16 %v151, %v147
    %v176 = vpack.c.b16 %v156, %v152
    %v177 = vpack.c.b16 %v157, %v153
    %v178 = vpack.c.b16 %v158, %v154
    %v179 = vpack.c.b16 %v159, %v155
    %vm200 = vcmask 654336
    %v202 = vsel %vm200, %v57, 0
    %204 = vmatprep.subr.bf16.mxu0 0
    %205 = vmatpush1.bf16.msra.mxu0 0
    %206 = vmatprep.subr.bf16.mxu0 0
    %207 = vmatpush1.bf16.msra.mxu0 0
    %208 = vmatprep.subr.bf16.mxu0 0
    %209 = vmatpush1.bf16.msra.mxu0 0
    %210 = vmatprep.subr.bf16.mxu0 %v177
    %211 = vmatpush1.bf16.msra.mxu0 %v176
    %212 = vmatprep.subr.bf16.mxu0 %v173
    %213 = vmatpush1.bf16.msra.mxu0 %v172
    %214 = vmatprep.subr.bf16.mxu0 %v169
    %215 = vmatpush1.bf16.msra.mxu0 %v168
    %216 = vmatprep.subr.bf16.mxu0 %v165
    %217 = vmatpush1.bf16.msra.mxu0 %v164
    %218 = vmatprep.subr.bf16.mxu0 %v161
    %219 = vmatpush1.bf16.msra.mxu0 %v160
    %220 = vmatprep.subr.bf16.mxu0 0
    %221 = vmatpush2.bf16.msra.mxu0 0
    %222 = vmatprep.subr.bf16.mxu0 0
    %223 = vmatpush2.bf16.msra.mxu0 0
    %224 = vmatprep.subr.bf16.mxu0 0
    %225 = vmatpush2.bf16.msra.mxu0 0
    %226 = vmatprep.subr.bf16.mxu0 0
    %227 = vmatpush2.bf16.msra.mxu0 0
    %228 = vmatprep.subr.bf16.mxu0 0
    %229 = vmatpush2.bf16.msra.mxu0 0
    %230 = vmatprep.subr.bf16.mxu0 0
    %231 = vmatpush2.bf16.msra.mxu0 0
    %232 = vmatprep.subr.bf16.mxu0 0
    %233 = vmatpush2.bf16.msra.mxu0 0
    %234 = vmatprep.subr.bf16.mxu0 0
    %235 = vmatpush2.bf16.msra.mxu0 0
    %236 = vmatprep.mubr.bf16.mxu0 0
    %237 = vmatmul.mubr.bf16.gmra.mxu0 %v202
    %v238 = vpop.f32.mrf.mxu0
    %v239 = vadd.f32 %v83, %v238
    %v240 = vpop.f32.mrf.mxu0
    %v241 = vadd.f32 %v87, %v240
    %v242 = vpop.f32.mrf.mxu0
    %v243 = vadd.f32 %v83, %v242
    %v244 = vpop.f32.mrf.mxu0
    %v245 = vadd.f32 %v87, %v244
    %246 = vdwg.mxu0
    %247 = vmatprep.subr.bf16.mxu0 0
    %248 = vmatpush1.bf16.msra.mxu0 0
    %249 = vmatprep.subr.bf16.mxu0 0
    %250 = vmatpush1.bf16.msra.mxu0 0
    %251 = vmatprep.subr.bf16.mxu0 0
    %252 = vmatpush1.bf16.msra.mxu0 0
    %253 = vmatprep.subr.bf16.mxu0 %v179
    %254 = vmatpush1.bf16.msra.mxu0 %v178
    %255 = vmatprep.subr.bf16.mxu0 %v175
    %256 = vmatpush1.bf16.msra.mxu0 %v174
    %257 = vmatprep.subr.bf16.mxu0 %v171
    %258 = vmatpush1.bf16.msra.mxu0 %v170
    %259 = vmatprep.subr.bf16.mxu0 %v167
    %260 = vmatpush1.bf16.msra.mxu0 %v166
    %261 = vmatprep.subr.bf16.mxu0 %v163
    %262 = vmatpush1.bf16.msra.mxu0 %v162
    %263 = vmatprep.subr.bf16.mxu0 0
    %264 = vmatpush2.bf16.msra.mxu0 0
    %265 = vmatprep.subr.bf16.mxu0 0
    %266 = vmatpush2.bf16.msra.mxu0 0
    %267 = vmatprep.subr.bf16.mxu0 0
    %268 = vmatpush2.bf16.msra.mxu0 0
    %269 = vmatprep.subr.bf16.mxu0 0
    %270 = vmatpush2.bf16.msra.mxu0 0
    %271 = vmatprep.subr.bf16.mxu0 0
    %272 = vmatpush2.bf16.msra.mxu0 0
    %273 = vmatprep.subr.bf16.mxu0 0
    %274 = vmatpush2.bf16.msra.mxu0 0
    %275 = vmatprep.subr.bf16.mxu0 0
    %276 = vmatpush2.bf16.msra.mxu0 0
    %277 = vmatprep.subr.bf16.mxu0 0
    %278 = vmatpush2.bf16.msra.mxu0 0
    %279 = vmatprep.mubr.bf16.mxu0 0
    %280 = vmatmul.mubr.bf16.gmra.mxu0 %v202
    %v281 = vpop.f32.mrf.mxu0
    %v282 = vadd.f32 %v91, %v281
    %v283 = vpop.f32.mrf.mxu0
    %v284 = vadd.f32 %v95, %v283
    %v285 = vpop.f32.mrf.mxu0
    %v286 = vadd.f32 %v91, %v285
    %v287 = vpop.f32.mrf.mxu0
    %v288 = vadd.f32 %v95, %v287
    %289 = vdwg.mxu0
    %v290 = vmax.f32 %v239, 0.0
    %v291 = vmax.f32 %v241, 0.0
    %v292 = vmax.f32 %v282, 0.0
    %v293 = vmax.f32 %v284, 0.0
    %v294 = vmax.f32 %v243, 0.0
    %v295 = vmax.f32 %v245, 0.0
    %v296 = vmax.f32 %v286, 0.0
    %v297 = vmax.f32 %v288, 0.0
    %v298 = vpack.c.bf16 %v294, %v290
    %v299 = vpack.c.bf16 %v295, %v291
    %v300 = vpack.c.bf16 %v296, %v292
    %v301 = vpack.c.bf16 %v297, %v293
    %v302 = vld [vmem:[#allocation4] sm:$0xf]
    %v303 = vld [vmem:[#allocation4 + $0x4] sm:$0xf]
    %v304 = vld [vmem:[#allocation4 + $0x8] sm:$0xf]
    %v305 = vld [vmem:[#allocation4 + $0xc] sm:$0xf]
    %v306 = vld [vmem:[#allocation4 + $0x10] sm:$0xf]
    %v307 = vld [vmem:[#allocation4 + $0x14] sm:$0xf]
    %v308 = vld [vmem:[#allocation4 + $0x18] sm:$0xf]
    %v309 = vld [vmem:[#allocation4 + $0x1c] sm:$0xf]
    %v310 = vld [vmem:[#allocation4 + $0x20] sm:$0xf]
    %v311 = vld [vmem:[#allocation4 + $0x24] sm:$0xf]
    %v312 = vld [vmem:[#allocation4 + $0x28] sm:$0xf]
    %v313 = vld [vmem:[#allocation4 + $0x2c] sm:$0xf]
    %v314 = vld [vmem:[#allocation4 + $0x30] sm:$0xf]
    %v315 = vld [vmem:[#allocation4 + $0x34] sm:$0xf]
    %v316 = vld [vmem:[#allocation4 + $0x38] sm:$0xf]
    %v317 = vld [vmem:[#allocation4 + $0x3c] sm:$0xf]
    %v318 = vld [vmem:[#allocation4 + $0x40] sm:$0xf]
    %v319 = vld [vmem:[#allocation4 + $0x44] sm:$0xf]
    %v320 = vld [vmem:[#allocation4 + $0x48] sm:$0xf]
    %v321 = vld [vmem:[#allocation4 + $0x4c] sm:$0xf]
    %v322 = vld [vmem:[#allocation4 + $0x50] sm:$0xf]
    %v323 = vld [vmem:[#allocation4 + $0x54] sm:$0xf]
    %v324 = vld [vmem:[#allocation4 + $0x58] sm:$0xf]
    %v325 = vld [vmem:[#allocation4 + $0x5c] sm:$0xf]
    %v326 = vld [vmem:[#allocation4 + $0x60] sm:$0xf]
    %v327 = vld [vmem:[#allocation4 + $0x64] sm:$0xf]
    %v328 = vld [vmem:[#allocation4 + $0x68] sm:$0xf]
    %v329 = vld [vmem:[#allocation4 + $0x6c] sm:$0xf]
    %v330 = vld [vmem:[#allocation4 + $0x70] sm:$0xf]
    %v331 = vld [vmem:[#allocation4 + $0x74] sm:$0xf]
    %v332 = vld [vmem:[#allocation4 + $0x78] sm:$0xf]
    %v333 = vld [vmem:[#allocation4 + $0x7c] sm:$0xf]
    %v334 = vld [vmem:[#allocation4 + $0x80] sm:$0xf]
    %v335 = vld [vmem:[#allocation4 + $0x84] sm:$0xf]
    %v336 = vld [vmem:[#allocation4 + $0x88] sm:$0xf]
    %v337 = vld [vmem:[#allocation4 + $0x8c] sm:$0xf]
    %v338 = vld [vmem:[#allocation4 + $0x90] sm:$0xf]
    %v339 = vld [vmem:[#allocation4 + $0x94] sm:$0xf]
    %v340 = vld [vmem:[#allocation4 + $0x98] sm:$0xf]
    %v341 = vld [vmem:[#allocation4 + $0x9c] sm:$0xf]
    %v342 = vld [vmem:[#allocation4 + $0xa0] sm:$0xf]
    %v343 = vld [vmem:[#allocation4 + $0xa4] sm:$0xf]
    %v344 = vld [vmem:[#allocation4 + $0xa8] sm:$0xf]
    %v345 = vld [vmem:[#allocation4 + $0xac] sm:$0xf]
    %v346 = vld [vmem:[#allocation4 + $0xb0] sm:$0xf]
    %v347 = vld [vmem:[#allocation4 + $0xb4] sm:$0xf]
    %v348 = vld [vmem:[#allocation4 + $0xb8] sm:$0xf]
    %v349 = vld [vmem:[#allocation4 + $0xbc] sm:$0xf]
    %v350 = vld [vmem:[#allocation4 + $0xc0] sm:$0xf]
    %v351 = vld [vmem:[#allocation4 + $0xc4] sm:$0xf]
    %v352 = vld [vmem:[#allocation4 + $0xc8] sm:$0xf]
    %v353 = vld [vmem:[#allocation4 + $0xcc] sm:$0xf]
    %v354 = vld [vmem:[#allocation4 + $0xd0] sm:$0xf]
    %v355 = vld [vmem:[#allocation4 + $0xd4] sm:$0xf]
    %v356 = vld [vmem:[#allocation4 + $0xd8] sm:$0xf]
    %v357 = vld [vmem:[#allocation4 + $0xdc] sm:$0xf]
    %v358 = vld [vmem:[#allocation4 + $0xe0] sm:$0xf]
    %v359 = vld [vmem:[#allocation4 + $0xe4] sm:$0xf]
    %v360 = vld [vmem:[#allocation4 + $0xe8] sm:$0xf]
    %v361 = vld [vmem:[#allocation4 + $0xec] sm:$0xf]
    %v362 = vld [vmem:[#allocation4 + $0xf0] sm:$0xf]
    %v363 = vld [vmem:[#allocation4 + $0xf4] sm:$0xf]
    %v364 = vld [vmem:[#allocation4 + $0xf8] sm:$0xf]
    %v365 = vld [vmem:[#allocation4 + $0xfc] sm:$0xf]
    %v366 = vld [vmem:[%s4] sm:$0x1]
    %v368 = vlaneseq
    %v369 = vshrl.u32 %v368, 7
    %v370 = vsub.s32 0, %v369
    %v371 = vrot.slane %v366, %v370
    %v437 = vunpack.c.l.b16 %v302
    %v438 = vunpack.c.l.b16 %v303
    %v439 = vunpack.c.l.b16 %v304
    %v440 = vunpack.c.l.b16 %v305
    %v441 = vunpack.c.l.b16 %v306
    %v442 = vunpack.c.l.b16 %v307
    %v443 = vunpack.c.l.b16 %v308
    %v444 = vunpack.c.l.b16 %v309
    %v445 = vunpack.c.l.b16 %v310
    %v446 = vunpack.c.l.b16 %v311
    %v447 = vunpack.c.l.b16 %v312
    %v448 = vunpack.c.l.b16 %v313
    %v449 = vunpack.c.l.b16 %v314
    %v450 = vunpack.c.l.b16 %v315
    %v451 = vunpack.c.l.b16 %v316
    %v452 = vunpack.c.l.b16 %v317
    %v453 = vunpack.c.l.b16 %v318
    %v454 = vunpack.c.l.b16 %v319
    %v455 = vunpack.c.l.b16 %v320
    %v456 = vunpack.c.l.b16 %v321
    %v457 = vunpack.c.l.b16 %v322
    %v458 = vunpack.c.l.b16 %v323
    %v459 = vunpack.c.l.b16 %v324
    %v460 = vunpack.c.l.b16 %v325
    %v461 = vunpack.c.l.b16 %v326
    %v462 = vunpack.c.l.b16 %v327
    %v463 = vunpack.c.l.b16 %v328
    %v464 = vunpack.c.l.b16 %v329
    %v465 = vunpack.c.l.b16 %v330
    %v466 = vunpack.c.l.b16 %v331
    %v467 = vunpack.c.l.b16 %v332
    %v468 = vunpack.c.l.b16 %v333
    %v469 = vunpack.c.l.b16 %v334
    %v470 = vunpack.c.l.b16 %v335
    %v471 = vunpack.c.l.b16 %v336
    %v472 = vunpack.c.l.b16 %v337
    %v473 = vunpack.c.l.b16 %v338
    %v474 = vunpack.c.l.b16 %v339
    %v475 = vunpack.c.l.b16 %v340
    %v476 = vunpack.c.l.b16 %v341
    %v477 = vunpack.c.l.b16 %v342
    %v478 = vunpack.c.l.b16 %v343
    %v479 = vunpack.c.l.b16 %v344
    %v480 = vunpack.c.l.b16 %v345
    %v481 = vunpack.c.l.b16 %v346
    %v482 = vunpack.c.l.b16 %v347
    %v483 = vunpack.c.l.b16 %v348
    %v484 = vunpack.c.l.b16 %v349
    %v485 = vunpack.c.l.b16 %v350
    %v486 = vunpack.c.l.b16 %v351
    %v487 = vunpack.c.l.b16 %v352
    %v488 = vunpack.c.l.b16 %v353
    %v489 = vunpack.c.l.b16 %v354
    %v490 = vunpack.c.l.b16 %v355
    %v491 = vunpack.c.l.b16 %v356
    %v492 = vunpack.c.l.b16 %v357
    %v493 = vunpack.c.l.b16 %v358
    %v494 = vunpack.c.l.b16 %v359
    %v495 = vunpack.c.l.b16 %v360
    %v496 = vunpack.c.l.b16 %v361
    %v497 = vunpack.c.l.b16 %v362
    %v498 = vunpack.c.l.b16 %v363
    %v499 = vunpack.c.l.b16 %v364
    %v500 = vunpack.c.l.b16 %v365
    %v501 = vpack.c.b16 %v438, %v437
    %v502 = vpack.c.b16 %v440, %v439
    %v503 = vpack.c.b16 %v442, %v441
    %v504 = vpack.c.b16 %v444, %v443
    %v505 = vpack.c.b16 %v446, %v445
    %v506 = vpack.c.b16 %v448, %v447
    %v507 = vpack.c.b16 %v450, %v449
    %v508 = vpack.c.b16 %v452, %v451
    %v509 = vpack.c.b16 %v454, %v453
    %v510 = vpack.c.b16 %v456, %v455
    %v511 = vpack.c.b16 %v458, %v457
    %v512 = vpack.c.b16 %v460, %v459
    %v513 = vpack.c.b16 %v462, %v461
    %v514 = vpack.c.b16 %v464, %v463
    %v515 = vpack.c.b16 %v466, %v465
    %v516 = vpack.c.b16 %v468, %v467
    %v517 = vpack.c.b16 %v470, %v469
    %v518 = vpack.c.b16 %v472, %v471
    %v519 = vpack.c.b16 %v474, %v473
    %v520 = vpack.c.b16 %v476, %v475
    %v521 = vpack.c.b16 %v478, %v477
    %v522 = vpack.c.b16 %v480, %v479
    %v523 = vpack.c.b16 %v482, %v481
    %v524 = vpack.c.b16 %v484, %v483
    %v525 = vpack.c.b16 %v486, %v485
    %v526 = vpack.c.b16 %v488, %v487
    %v527 = vpack.c.b16 %v490, %v489
    %v528 = vpack.c.b16 %v492, %v491
    %v529 = vpack.c.b16 %v494, %v493
    %v530 = vpack.c.b16 %v496, %v495
    %v531 = vpack.c.b16 %v498, %v497
    %v532 = vpack.c.b16 %v500, %v499
    %565 = vmatprep.subr.bf16.mxu0 0
    %566 = vmatpush1.bf16.msra.mxu0 %v508
    %567 = vmatprep.subr.bf16.mxu0 0
    %568 = vmatpush1.bf16.msra.mxu0 %v507
    %569 = vmatprep.subr.bf16.mxu0 0
    %570 = vmatpush1.bf16.msra.mxu0 %v506
    %571 = vmatprep.subr.bf16.mxu0 0
    %572 = vmatpush1.bf16.msra.mxu0 %v505
    %573 = vmatprep.subr.bf16.mxu0 0
    %574 = vmatpush1.bf16.msra.mxu0 %v504
    %575 = vmatprep.subr.bf16.mxu0 0
    %576 = vmatpush1.bf16.msra.mxu0 %v503
    %577 = vmatprep.subr.bf16.mxu0 0
    %578 = vmatpush1.bf16.msra.mxu0 %v502
    %579 = vmatprep.subr.bf16.mxu0 0
    %580 = vmatpush1.bf16.msra.mxu0 %v501
    %581 = vmatprep.subr.bf16.mxu0 0
    %582 = vmatpush2.bf16.msra.mxu0 %v516
    %583 = vmatprep.subr.bf16.mxu0 0
    %584 = vmatpush2.bf16.msra.mxu0 %v515
    %585 = vmatprep.subr.bf16.mxu0 0
    %586 = vmatpush2.bf16.msra.mxu0 %v514
    %587 = vmatprep.subr.bf16.mxu0 0
    %588 = vmatpush2.bf16.msra.mxu0 %v513
    %589 = vmatprep.subr.bf16.mxu0 0
    %590 = vmatpush2.bf16.msra.mxu0 %v512
    %591 = vmatprep.subr.bf16.mxu0 0
    %592 = vmatpush2.bf16.msra.mxu0 %v511
    %593 = vmatprep.subr.bf16.mxu0 0
    %594 = vmatpush2.bf16.msra.mxu0 %v510
    %595 = vmatprep.subr.bf16.mxu0 0
    %596 = vmatpush2.bf16.msra.mxu0 %v509
    %597 = vmatprep.mubr.bf16.mxu0 %v299
    %598 = vmatmul.mubr.bf16.gmra.mxu0 %v298
    %v599 = vpop.f32.mrf.mxu0
    %v600 = vadd.f32 %v371, %v599
    %v601 = vpop.f32.mrf.mxu0
    %v602 = vpop.f32.mrf.mxu0
    %v603 = vadd.f32 %v371, %v602
    %v604 = vpop.f32.mrf.mxu0
    %605 = vdwg.mxu0
    %606 = vmatprep.subr.bf16.mxu0 0
    %607 = vmatpush1.bf16.msra.mxu0 %v524
    %608 = vmatprep.subr.bf16.mxu0 0
    %609 = vmatpush1.bf16.msra.mxu0 %v523
    %610 = vmatprep.subr.bf16.mxu0 0
    %611 = vmatpush1.bf16.msra.mxu0 %v522
    %612 = vmatprep.subr.bf16.mxu0 0
    %613 = vmatpush1.bf16.msra.mxu0 %v521
    %614 = vmatprep.subr.bf16.mxu0 0
    %615 = vmatpush1.bf16.msra.mxu0 %v520
    %616 = vmatprep.subr.bf16.mxu0 0
    %617 = vmatpush1.bf16.msra.mxu0 %v519
    %618 = vmatprep.subr.bf16.mxu0 0
    %619 = vmatpush1.bf16.msra.mxu0 %v518
    %620 = vmatprep.subr.bf16.mxu0 0
    %621 = vmatpush1.bf16.msra.mxu0 %v517
    %622 = vmatprep.subr.bf16.mxu0 0
    %623 = vmatpush2.bf16.msra.mxu0 %v532
    %624 = vmatprep.subr.bf16.mxu0 0
    %625 = vmatpush2.bf16.msra.mxu0 %v531
    %626 = vmatprep.subr.bf16.mxu0 0
    %627 = vmatpush2.bf16.msra.mxu0 %v530
    %628 = vmatprep.subr.bf16.mxu0 0
    %629 = vmatpush2.bf16.msra.mxu0 %v529
    %630 = vmatprep.subr.bf16.mxu0 0
    %631 = vmatpush2.bf16.msra.mxu0 %v528
    %632 = vmatprep.subr.bf16.mxu0 0
    %633 = vmatpush2.bf16.msra.mxu0 %v527
    %634 = vmatprep.subr.bf16.mxu0 0
    %635 = vmatpush2.bf16.msra.mxu0 %v526
    %636 = vmatprep.subr.bf16.mxu0 0
    %637 = vmatpush2.bf16.msra.mxu0 %v525
    %638 = vmatprep.mubr.bf16.mxu0 %v301
    %639 = vmatmul.mubr.bf16.gmra.mxu0 %v300
    %v640 = vpop.f32.mrf.mxu0
    %v641 = vadd.f32 %v600, %v640
    %v642 = vpop.f32.mrf.mxu0
    %v643 = vpop.f32.mrf.mxu0
    %v644 = vadd.f32 %v603, %v643
    %v645 = vpop.f32.mrf.mxu0
    %646 = vdwg.mxu0
    %v647 = vmax.f32 %v641, 0.0
    %v648 = vmax.f32 %v644, 0.0
    %v649 = vpack.c.bf16 %v648, %v647
    %v650 = vld [vmem:[%s5] sm:$0xf]
    %v651 = vld [vmem:[%s5 + $0x4] sm:$0xf]
    %v652 = vld [vmem:[%s5 + $0x8] sm:$0xf]
    %v653 = vld [vmem:[%s5 + $0xc] sm:$0xf]
    %v654 = vld [vmem:[%s5 + $0x10] sm:$0xf]
    %v655 = vld [vmem:[%s5 + $0x14] sm:$0xf]
    %v656 = vld [vmem:[%s5 + $0x18] sm:$0xf]
    %v657 = vld [vmem:[%s5 + $0x1c] sm:$0xf]
    %v658 = vld [vmem:[%s5 + $0x20] sm:$0xf]
    %v659 = vld [vmem:[%s5 + $0x24] sm:$0xf]
    %v660 = vld [vmem:[%s5 + $0x28] sm:$0xf]
    %v661 = vld [vmem:[%s5 + $0x2c] sm:$0xf]
    %v662 = vld [vmem:[%s5 + $0x30] sm:$0xf]
    %v663 = vld [vmem:[%s5 + $0x34] sm:$0xf]
    %v664 = vld [vmem:[%s5 + $0x38] sm:$0xf]
    %v665 = vld [vmem:[%s5 + $0x3c] sm:$0xf]
    %v666 = vld [vmem:[%s6] sm:$0x1]
    %v668 = vlaneseq
    %v669 = vshrl.u32 %v668, 7
    %v670 = vsub.s32 0, %v669
    %v671 = vrot.slane %v666, %v670
    %v689 = vunpack.c.l.b16 %v650
    %v690 = vunpack.c.l.b16 %v651
    %v691 = vunpack.c.l.b16 %v652
    %v692 = vunpack.c.l.b16 %v653
    %v693 = vunpack.c.l.b16 %v654
    %v694 = vunpack.c.l.b16 %v655
    %v695 = vunpack.c.l.b16 %v656
    %v696 = vunpack.c.l.b16 %v657
    %v697 = vunpack.c.l.b16 %v658
    %v698 = vunpack.c.l.b16 %v659
    %v699 = vunpack.c.l.b16 %v660
    %v700 = vunpack.c.l.b16 %v661
    %v701 = vunpack.c.l.b16 %v662
    %v702 = vunpack.c.l.b16 %v663
    %v703 = vunpack.c.l.b16 %v664
    %v704 = vunpack.c.l.b16 %v665
    %v705 = vpack.c.b16 %v690, %v689
    %v706 = vpack.c.b16 %v692, %v691
    %v707 = vpack.c.b16 %v694, %v693
    %v708 = vpack.c.b16 %v696, %v695
    %v709 = vpack.c.b16 %v698, %v697
    %v710 = vpack.c.b16 %v700, %v699
    %v711 = vpack.c.b16 %v702, %v701
    %v712 = vpack.c.b16 %v704, %v703
    %721 = vmatprep.subr.bf16.mxu0 0
    %722 = vmatpush1.bf16.msra.mxu0 %v712
    %723 = vmatprep.subr.bf16.mxu0 0
    %724 = vmatpush1.bf16.msra.mxu0 %v711
    %725 = vmatprep.subr.bf16.mxu0 0
    %726 = vmatpush1.bf16.msra.mxu0 %v710
    %727 = vmatprep.subr.bf16.mxu0 0
    %728 = vmatpush1.bf16.msra.mxu0 %v709
    %729 = vmatprep.subr.bf16.mxu0 0
    %730 = vmatpush1.bf16.msra.mxu0 %v708
    %731 = vmatprep.subr.bf16.mxu0 0
    %732 = vmatpush1.bf16.msra.mxu0 %v707
    %733 = vmatprep.subr.bf16.mxu0 0
    %734 = vmatpush1.bf16.msra.mxu0 %v706
    %735 = vmatprep.subr.bf16.mxu0 0
    %736 = vmatpush1.bf16.msra.mxu0 %v705
    %737 = vmatprep.subr.bf16.mxu0 0
    %738 = vmatpush2.bf16.msra.mxu0 0
    %739 = vmatprep.subr.bf16.mxu0 0
    %740 = vmatpush2.bf16.msra.mxu0 0
    %741 = vmatprep.subr.bf16.mxu0 0
    %742 = vmatpush2.bf16.msra.mxu0 0
    %743 = vmatprep.subr.bf16.mxu0 0
    %744 = vmatpush2.bf16.msra.mxu0 0
    %745 = vmatprep.subr.bf16.mxu0 0
    %746 = vmatpush2.bf16.msra.mxu0 0
    %747 = vmatprep.subr.bf16.mxu0 0
    %748 = vmatpush2.bf16.msra.mxu0 0
    %749 = vmatprep.subr.bf16.mxu0 0
    %750 = vmatpush2.bf16.msra.mxu0 0
    %751 = vmatprep.subr.bf16.mxu0 0
    %752 = vmatpush2.bf16.msra.mxu0 0
    %753 = vmatprep.mubr.bf16.mxu0 0
    %754 = vmatmul.mubr.bf16.gmra.mxu0 %v649
    %v755 = vpop.f32.mrf.mxu0
    %v756 = vadd.f32 %v671, %v755
    %v757 = vpop.f32.mrf.mxu0
    %v758 = vpop.f32.mrf.mxu0
    %v759 = vadd.f32 %v671, %v758
    %v760 = vpop.f32.mrf.mxu0
    %761 = vdwg.mxu0
    %vm762 = vcmask 15360
    %763 = vst.msk [vmem:[#allocation6] sm:$0xff] %vm762, %v756
    %764 = vst.msk [vmem:[#allocation6 + $0x8] sm:$0xff] %vm762, %v759
    // Predicated region
    $region38: #{tpu_custom_call.1} parent=1 // pred_check
      _
    $region39: #{tpu_custom_call.1} parent=1 // pred_check_branch
      %766 = sbr.rel (0) target = $region41
    $region40: #{tpu_custom_call.1} parent=1 // pred_region
      // Predicated region
      $region42: #{tpu_custom_call.1} parent=40 // pred_check
        _
      $region43: #{tpu_custom_call.1} parent=40 // pred_check_branch
        %768 = sbr.rel (0) target = $region45
      $region44: #{tpu_custom_call.1} parent=40 // pred_region
        // Predicated region
        $region46: #{tpu_custom_call.1} parent=44 // pred_check
          _
        $region47: #{tpu_custom_call.1} parent=44 // pred_check_branch
          %770 = sbr.rel target = $region49
        $region48: #{tpu_custom_call.1} parent=44 // pred_region
          // Predicated region
          $region61: #{tpu_custom_call.1} parent=48 // pred_check
            _
          $region62: #{tpu_custom_call.1} parent=48 // pred_check_branch
            %786 = sbr.rel (0) target = $region64
          $region63: #{tpu_custom_call.1} parent=48 // pred_region
            %s788 = ssub.s32 16, 1
            loop: start=0, step=1, limit=1
            $region65: #{tpu_custom_call.1} parent=63 // loop_pre_header
              _
            $region66: #{tpu_custom_call.1} parent=63 // loop_header
              %s790 = sphi 0, %s794
              %p791 = scmp.ge.s32.totalorder %s790, 1
              %s795 = sphi [#allocation6], [#allocation6]
              %s796 = sphi %s7, %s7
            $region67: #{tpu_custom_call.1} parent=63 // loop_header_branch
              %793 = sbr.rel (%p791) target = $region71
            $region68: #{tpu_custom_call.1} parent=63 // loop_body
              %v797 = vld [vmem:[%s795] sm:%s788]
              %798 = vst [vmem:[%s796] sm:%s788] %v797
            $region69: #{tpu_custom_call.1} parent=63 // loop_footer
              %s794 = sadd.s32 1, %s790
            $region70: #{tpu_custom_call.1} parent=63 // loop_footer_branch
              %789 = sbr.rel target = $region66
            $region71: #{tpu_custom_call.1} parent=63 // loop_exit
              _
          $region64: #{tpu_custom_call.1} parent=48 // pred_fallthru
            _
        $region49: #{tpu_custom_call.1} parent=44 // pred_fallthru
          _
        // Predicated region
        $region50: #{tpu_custom_call.1} parent=44 // pred_check
          _
        $region51: #{tpu_custom_call.1} parent=44 // pred_check_branch
          %772 = sbr.rel (0) target = $region53
        $region52: #{tpu_custom_call.1} parent=44 // pred_region
          %s774 = ssub.s32 16, 1
          loop: start=0, step=1, limit=1
          $region54: #{tpu_custom_call.1} parent=52 // loop_pre_header
            _
          $region55: #{tpu_custom_call.1} parent=52 // loop_header
            %s776 = sphi 0, %s780
            %p777 = scmp.ge.s32.totalorder %s776, 1
            %s781 = sphi [#allocation6], [#allocation6]
            %s782 = sphi %s7, %s7
          $region56: #{tpu_custom_call.1} parent=52 // loop_header_branch
            %779 = sbr.rel (%p777) target = $region60
          $region57: #{tpu_custom_call.1} parent=52 // loop_body
            %v783 = vld [vmem:[%s781] sm:%s774]
            %784 = vst [vmem:[%s782] sm:%s774] %v783
          $region58: #{tpu_custom_call.1} parent=52 // loop_footer
            %s780 = sadd.s32 1, %s776
          $region59: #{tpu_custom_call.1} parent=52 // loop_footer_branch
            %775 = sbr.rel target = $region55
          $region60: #{tpu_custom_call.1} parent=52 // loop_exit
            _
        $region53: #{tpu_custom_call.1} parent=44 // pred_fallthru
          _
      $region45: #{tpu_custom_call.1} parent=40 // pred_fallthru
        _
      %799 = vnop
    $region41: #{tpu_custom_call.1} parent=1 // pred_fallthru
      _
    // Predicated region
    $region72: #{tpu_custom_call.1} parent=1 // pred_check
      _
    $region73: #{tpu_custom_call.1} parent=1 // pred_check_branch
      %801 = sbr.rel (0) target = $region75
    $region74: #{tpu_custom_call.1} parent=1 // pred_region
      _
    $region75: #{tpu_custom_call.1} parent=1 // pred_fallthru
      _
    %802 = vsyncpa [#allocation3], 1
    %803 = vsyncpa [#allocation5], 1

</llo_original>
